<compile_context>
chip_gen: v6e
topology: v6e:2x2x1
jax: 0.10.0
libtpu: 0.0.40
codegen_flags: <defaults>
</compile_context>

<pallas_src>
import functools

import jax
import jax.numpy as jnp
from jax import lax
from jax.experimental import pallas as pl
from jax.experimental.pallas import tpu as pltpu

_NEG_PAD = -1e30  # sentinel for padded class columns; exp() underflows to 0.


def _lsr_loss_kernel(pre_ref, label_ref, loss_ref, *, n_classes, para_lsr):
    # pre_ref  : (tb, Cp) logits tile (Cp = classes padded to a multiple of 128)
    # label_ref: (tb, 1) int32 labels
    # loss_ref : (tb, 1) f32 per-row smoothed cross-entropy
    x = pre_ref[...].astype(jnp.float32)                     # (tb, Cp)
    tb, cp = x.shape

    col = lax.broadcasted_iota(jnp.int32, (tb, cp), 1)        # class index per lane
    valid = col < n_classes                                   # mask out padded columns

    # log-softmax (padded columns are ~ -1e30: never the max, exp() -> 0)
    m = jnp.max(x, axis=-1, keepdims=True)                    # (tb, 1)
    z = x - m
    lse = jnp.log(jnp.sum(jnp.exp(z), axis=-1, keepdims=True))
    lsm = z - lse                                              # (tb, Cp)
    lsm = jnp.where(valid, lsm, 0.0)                           # zero padded columns

    onehot = (col == label_ref[...]).astype(jnp.float32)       # (tb, Cp)

    sum_lsm = jnp.sum(lsm, axis=-1, keepdims=True)             # sum over real classes
    picked = jnp.sum(onehot * lsm, axis=-1, keepdims=True)     # lsm at the true class

    smooth = para_lsr / n_classes
    loss = -(smooth * sum_lsm) - (1.0 - para_lsr) * picked     # (tb, 1)
    loss_ref[...] = loss.astype(loss_ref.dtype)


def _round_up(x, m):
    return (x + m - 1) // m * m


def cross_entropy_loss_lsr(pre, label, para_lsr=0.2, size_average=True,
                           block_rows=512):
    """pre: (B, C) logits; label: (B,) int class ids. Returns a scalar loss."""
    pre = jnp.asarray(pre)
    label = jnp.asarray(label, dtype=jnp.int32)
    b, c = pre.shape

    # Lane-dense class dim: pad to a multiple of 128 with a large negative value.
    cp = _round_up(c, 128)
    if cp != c:
        pre = jnp.pad(pre, ((0, 0), (0, cp - c)), constant_values=_NEG_PAD)

    # Row-tile: multiple of 8 (sublane), capped so a double-buffered f32 tile
    # stays ~<= 4 MiB (fits v5e's 16 MiB scoped default and v7x's 64 MiB VMEM).
    bytes_per_row = cp * 4
    max_rows_vmem = max(8, ((4 * 1024 * 1024) // bytes_per_row) // 8 * 8)
    tb = min(block_rows, max_rows_vmem)
    if b <= tb:
        tb = b                      # whole-batch block (== full array dim: allowed)
    grid = (pl.cdiv(b, tb),)

    label2d = label.reshape(b, 1)

    kernel = functools.partial(
        _lsr_loss_kernel, n_classes=c, para_lsr=float(para_lsr))

    cost = pl.CostEstimate(
        flops=int(8 * b * cp),
        transcendentals=int(2 * b * cp),
        bytes_accessed=int(b * cp * pre.dtype.itemsize + b * 4 + b * 4),
    )

    per_row = pl.pallas_call(
        kernel,
        out_shape=jax.ShapeDtypeStruct((b, 1), jnp.float32),
        grid=grid,
        in_specs=[
            pl.BlockSpec((tb, cp), lambda i: (i, 0)),   # logits tile
            pl.BlockSpec((tb, 1), lambda i: (i, 0)),    # labels tile
        ],
        out_specs=pl.BlockSpec((tb, 1), lambda i: (i, 0)),
        compiler_params=pltpu.CompilerParams(
            dimension_semantics=("parallel",),          # batch tiles are independent
        ),
        cost_estimate=cost,
    )(pre, label2d)

    loss = per_row[:, 0]
    # size_average reduction is a trivial scalar op; done in JAX so the grid
    # stays fully parallel (no serial accumulator axis).
    return jnp.mean(loss) if size_average else jnp.sum(loss)


def _reference(pre, label, para_lsr, size_average=True):
    b, c = pre.shape
    one_hot = jnp.full((b, c), para_lsr / c, dtype=jnp.float32)
    one_hot = one_hot.at[jnp.arange(b), label].add(1.0 - para_lsr)
    lsm = jax.nn.log_softmax(pre.astype(jnp.float32), axis=-1)
    loss = jnp.sum(-one_hot * lsm, axis=1)
    return jnp.mean(loss) if size_average else jnp.sum(loss)


if __name__ == "__main__":
    key = jax.random.PRNGKey(0)
    kx, kl = jax.random.split(key)

    # Small shapes consistent with the module: a classification head (B, C) + labels.
    B, C = 8, 3
    pre = jax.random.normal(kx, (B, C), dtype=jnp.float32)
    label = jax.random.randint(kl, (B,), 0, C, dtype=jnp.int32)

    loss = cross_entropy_loss_lsr(pre, label, para_lsr=0.2, size_average=True)
    loss = jax.block_until_ready(loss)

    ref = _reference(pre, label, 0.2, True)
    assert loss.shape == ()
    assert jnp.allclose(loss, ref, atol=1e-5, rtol=1e-5), (loss, ref)

    # Second check: exercises the row grid (boundary block), class padding, and sum mode.
    B2, C2 = 300, 37
    pre2 = jax.random.normal(jax.random.PRNGKey(1), (B2, C2), dtype=jnp.float32)
    label2 = jax.random.randint(jax.random.PRNGKey(2), (B2,), 0, C2, dtype=jnp.int32)
    loss2 = cross_entropy_loss_lsr(pre2, label2, para_lsr=0.2,
                                   size_average=False, block_rows=128)
    loss2 = jax.block_until_ready(loss2)
    ref2 = _reference(pre2, label2, 0.2, False)
    assert jnp.allclose(loss2, ref2, atol=1e-4, rtol=1e-4), (loss2, ref2)

    print("KERNEL_OK")
</pallas_src>

<mosaic_0001>
module attributes {stable_mosaic.version = 11 : i64} {
  func.func @_lsr_loss_kernel(%arg0: i32, %arg1: memref<8x128xf32, #tpu.memory_space<vmem>>, %arg2: memref<8x1xi32, #tpu.memory_space<vmem>>, %arg3: memref<8x1xf32, #tpu.memory_space<vmem>>) attributes {dimension_semantics = [#tpu.dimension_semantics<parallel>], iteration_bounds = array<i64: 1>, scalar_prefetch = 0 : i64, scratch_operands = 0 : i64, tpu.core_type = #tpu.core_type<tc>, window_params = [{transform_indices = @transform_0, window_bounds = array<i64: 8, 128>}, {transform_indices = @transform_1, window_bounds = array<i64: 8, 1>}, {transform_indices = @transform_2, window_bounds = array<i64: 8, 1>}]} {
    %c0 = arith.constant 0 : index
    %c0_0 = arith.constant 0 : index
    %0 = vector.load %arg1[%c0, %c0_0] : memref<8x128xf32, #tpu.memory_space<vmem>>, vector<8x128xf32>
    %1 = tpu.iota {dimensions = array<i32: 1>} : vector<8x128xi32>
    %c3_i32 = arith.constant 3 : i32
    %2 = vector.broadcast %c3_i32 : i32 to vector<8x128xi32>
    %3 = arith.cmpi slt, %1, %2 : vector<8x128xi32>
    %cst = arith.constant dense<0xFF800000> : vector<8xf32>
    %4 = vector.multi_reduction <maximumf>, %0, %cst [1] : vector<8x128xf32> to vector<8xf32>
    %5 = vector.shape_cast %4 : vector<8xf32> to vector<8x1xf32>
    %6 = vector.broadcast %5 : vector<8x1xf32> to vector<8x128xf32>
    %7 = arith.subf %0, %6 : vector<8x128xf32>
    %8 = math.exp %7 : vector<8x128xf32>
    %cst_1 = arith.constant dense<0.000000e+00> : vector<8xf32>
    %9 = vector.multi_reduction <add>, %8, %cst_1 [1] : vector<8x128xf32> to vector<8xf32>
    %10 = vector.shape_cast %9 : vector<8xf32> to vector<8x1xf32>
    %11 = math.log %10 : vector<8x1xf32>
    %12 = vector.broadcast %11 : vector<8x1xf32> to vector<8x128xf32>
    %13 = arith.subf %7, %12 : vector<8x128xf32>
    %cst_2 = arith.constant 0.000000e+00 : f32
    %14 = vector.broadcast %cst_2 : f32 to vector<8x128xf32>
    %15 = arith.select %3, %13, %14 : vector<8x128xi1>, vector<8x128xf32>
    %c0_3 = arith.constant 0 : index
    %c0_4 = arith.constant 0 : index
    %16 = vector.load %arg2[%c0_3, %c0_4] : memref<8x1xi32, #tpu.memory_space<vmem>>, vector<8x1xi32>
    %17 = vector.broadcast %16 : vector<8x1xi32> to vector<8x128xi32>
    %18 = arith.cmpi eq, %1, %17 : vector<8x128xi32>
    %19 = arith.extui %18 : vector<8x128xi1> to vector<8x128xi32>
    %20 = arith.sitofp %19 : vector<8x128xi32> to vector<8x128xf32>
    %cst_5 = arith.constant dense<0.000000e+00> : vector<8xf32>
    %21 = vector.multi_reduction <add>, %15, %cst_5 [1] : vector<8x128xf32> to vector<8xf32>
    %22 = vector.shape_cast %21 : vector<8xf32> to vector<8x1xf32>
    %23 = arith.mulf %20, %15 : vector<8x128xf32>
    %cst_6 = arith.constant dense<0.000000e+00> : vector<8xf32>
    %24 = vector.multi_reduction <add>, %23, %cst_6 [1] : vector<8x128xf32> to vector<8xf32>
    %25 = vector.shape_cast %24 : vector<8xf32> to vector<8x1xf32>
    %cst_7 = arith.constant 0.0666666701 : f32
    %26 = vector.broadcast %cst_7 : f32 to vector<8x1xf32>
    %27 = arith.mulf %26, %22 : vector<8x1xf32>
    %cst_8 = arith.constant 0.000000e+00 : f32
    %28 = vector.broadcast %cst_8 : f32 to vector<8x1xf32>
    %29 = arith.subf %28, %27 : vector<8x1xf32>
    %cst_9 = arith.constant 8.000000e-01 : f32
    %30 = vector.broadcast %cst_9 : f32 to vector<8x1xf32>
    %31 = arith.mulf %30, %25 : vector<8x1xf32>
    %32 = arith.subf %29, %31 : vector<8x1xf32>
    %c0_10 = arith.constant 0 : index
    %c0_11 = arith.constant 0 : index
    %33 = vector.load %arg3[%c0_10, %c0_11] : memref<8x1xf32, #tpu.memory_space<vmem>>, vector<8x1xf32>
    tpu.vector_store %arg3[%c0_10, %c0_11], %32 {strides = array<i32>} : memref<8x1xf32, #tpu.memory_space<vmem>>, vector<8x1xf32>,
    return
  }
  func.func @transform_0(%arg0: i32) -> (i32, i32) {
    %c0_i32 = arith.constant 0 : i32
    %c0_i32_0 = arith.constant 0 : i32
    return %arg0, %c0_i32 : i32, i32
  }
  func.func @transform_1(%arg0: i32) -> (i32, i32) {
    %c0_i32 = arith.constant 0 : i32
    %c0_i32_0 = arith.constant 0 : i32
    return %arg0, %c0_i32 : i32, i32
  }
  func.func @transform_2(%arg0: i32) -> (i32, i32) {
    %c0_i32 = arith.constant 0 : i32
    %c0_i32_0 = arith.constant 0 : i32
    return %arg0, %c0_i32 : i32, i32
  }
}

</mosaic_0001>

<llo_original>
// kernel: tpu_custom_call.1
$region0: #{tpu_custom_call.1}
  #allocation0 [shape = 'u32[]', space=smem, size = 0x4, offset = 0x4, fixed_abs, tag = 'smem constant byte address 0x4 - core index']
  #allocation1 [shape = 'u32[144,128]{1,0:T(1,128)}', space=vmem, size = 0x12000, scoped, tag = 'internal scratch']
  %s0 = inlined_call_operand.vmem [shape: f32[8,128], index: 0, kind: input, shape index: {}]
  %s1 = inlined_call_operand.vmem [shape: s32[8,1], index: 1, kind: input, shape index: {}]
  %s2 = inlined_call_operand.vmem [shape: f32[8,1], index: 2, kind: output, shape index: {}]
  %s3 = sld [smem:[#allocation0]]
  $region18: #{tpu_custom_call.1} parent=0
    _
  %s5 = ssub.s32 1, %s3
  %s6 = scalar_select 0, %s5, %s3
  // Predicated region
  $region2: #{tpu_custom_call.1} parent=0 // pred_check
    _
  $region3: #{tpu_custom_call.1} parent=0 // pred_check_branch
    %8 = sbr.rel (0) target = $region5
  $region4: #{tpu_custom_call.1} parent=0 // pred_region
    _
  $region5: #{tpu_custom_call.1} parent=0 // pred_fallthru
    _
  // Predicated region
  $region6: #{tpu_custom_call.1} parent=0 // pred_check
    _
  $region7: #{tpu_custom_call.1} parent=0 // pred_check_branch
    %10 = sbr.rel (0) target = $region9
  $region8: #{tpu_custom_call.1} parent=0 // pred_region
    _
  $region9: #{tpu_custom_call.1} parent=0 // pred_fallthru
    _
  %v11 = vld [vmem:[%s0] sm:$0xff]
  %v12 = vlaneseq
  %v13 = vand.u32 %v12, 127
  %vm14 = vcmp.lt.s32.totalorder %v13, 3
  %15 = vmax.xlane.f32.xlu0 %v11
  %v16 = vpop.xlane.xlu0 %15
  %v17 = vsub.f32 %v11, %v16
  %v18 = vmul.f32 %v17, 1.442695
  %v19 = vpow.pop %v18
  %20 = vadd.xlane.f32.xlu0 %v19
  %v21 = vpop.xlane.xlu0 %20
  %v22 = vlog2.pop %v21
  %v23 = vmul.f32 %v22, 0.6931472
  %v24 = vsub.f32 %v17, %v23
  %v25 = vsel %vm14, %v24, 0.0
  %v26 = vld [vmem:[%s1] sm:$0xff]
  %27 = vset.pattern.permute.xlu0 0
  %28 = vperm.xlu0 %27, %v26
  %v29 = vpop.permute.xlu0 %28
  %vm30 = vcmp.eq.s32.totalorder %v13, %v29
  %v31 = vsel %vm30, 1, 0
  %v32 = vcvt.s32.f32 %v31
  %33 = vadd.xlane.f32.xlu0 %v25
  %v34 = vpop.xlane.xlu0 %33
  %v35 = vmul.f32 %v32, %v25
  %36 = vadd.xlane.f32.xlu0 %v35
  %v37 = vpop.xlane.xlu0 %36
  %v38 = vmul.f32 %v34, 0.06666667
  %v39 = vsub.f32 0.0, %v38
  %v40 = vmul.f32 %v37, 0.8
  %v41 = vsub.f32 %v39, %v40
  %vm42 = vcmask 7168
  %43 = vst.msk [vmem:[%s2] sm:$0xff] %vm42, %v41
  // Predicated region
  $region10: #{tpu_custom_call.1} parent=0 // pred_check
    _
  $region11: #{tpu_custom_call.1} parent=0 // pred_check_branch
    %45 = sbr.rel (0) target = $region13
  $region12: #{tpu_custom_call.1} parent=0 // pred_region
    _
  $region13: #{tpu_custom_call.1} parent=0 // pred_fallthru
    _
  // Predicated region
  $region14: #{tpu_custom_call.1} parent=0 // pred_check
    _
  $region15: #{tpu_custom_call.1} parent=0 // pred_check_branch
    %47 = sbr.rel (0) target = $region17
  $region16: #{tpu_custom_call.1} parent=0 // pred_region
    _
  $region17: #{tpu_custom_call.1} parent=0 // pred_fallthru
    _

</llo_original>
